<compile_context>
chip_gen: v7x
topology: tpu7x:2x2x1
jax: 0.10.0
libtpu: 0.0.40
codegen_flags: <defaults>
</compile_context>

<pallas_src>
import functools
import math

import jax
import jax.numpy as jnp
from jax.experimental import pallas as pl
from jax.experimental.pallas import tpu as pltpu

_LANES = 128
_SUBLANES = 8


def _bsgen_kernel(src_ref, seq_ref, idx_ref, out_ref, *, rng_len: int):
    """out[...] = (src[...] > seq[idx[...], ...]) cast to out dtype.

    Refs are either 3-D (rb, sb, 128)/(rng_len, sb, 128) (main packed path) or
    2-D (rows, post)/(rng_len, post) (fallback path); the body is rank-agnostic.
    """
    idx = idx_ref[...]
    src = src_ref[...]

    # Per-element gather along the rng_seq leading axis via an unrolled select
    # scan over resident VMEM tiles: gathered = seq[idx].  Index 0 (and any
    # out-of-range index) is covered by the initialization.
    gathered = jnp.broadcast_to(seq_ref[0:1], idx.shape)
    for k in range(1, rng_len):
        gathered = jnp.where(idx == k, seq_ref[k:k + 1], gathered)

    out_ref[...] = (src > gathered).astype(out_ref.dtype)


def _pick_blocks(pre, rows, nsub, rng_len, io_bytes, seq_bytes):
    """Choose (row_block, sub_block) for the (pre, rows, nsub, 128) layout."""
    # Per-pipeline-stage VMEM budget.  Pallas double-buffers every BlockSpec, so
    # the in-flight footprint is ~2x this (~12 MiB): inside v5e's 16 MiB scoped
    # default and well under v7x's 64 MiB physical VMEM.
    budget = 6 * 1024 * 1024

    # rows is NOT one of the last-two (tiled) dims, so any row block is legal.
    rb = rows if rows <= 512 else 256
    # Shrink the row block if even a minimal 8-sublane column block busts the budget.
    while rb > 8 and _LANES * _SUBLANES * (rb * io_bytes + rng_len * seq_bytes) > budget:
        rb = max(8, rb // 2)

    per_sub = _LANES * (rb * io_bytes + rng_len * seq_bytes)
    sb = max(_SUBLANES, budget // per_sub)

    # Keep >= ~8 sizable grid steps when the problem allows, so DMA/compute
    # pipeline and both v7x TensorCores get work.
    steps = pre * pl.cdiv(rows, rb)
    if steps * pl.cdiv(nsub, sb) < 8 and nsub > _SUBLANES:
        sb = pl.cdiv(nsub, max(1, 8 // steps))

    if sb >= nsub:
        return rb, nsub                                    # full dim: always legal
    return rb, max(_SUBLANES, (sb // _SUBLANES) * _SUBLANES)  # sublane-dim multiple of 8


def bsgen_multi(source, rng_seq, rng_idx, dim=0, stype=jnp.float32):
    """Pallas implementation of BSGenMulti.forward(rng_idx)."""
    dim = dim % rng_idx.ndim
    if not jnp.issubdtype(rng_idx.dtype, jnp.integer):
        rng_idx = rng_idx.astype(jnp.int32)
    # gather's output takes rng_idx's shape; gt broadcasts source against it.
    if source.shape != rng_idx.shape:
        source = jnp.broadcast_to(source, rng_idx.shape)
    # TODO(synk): torch.gather allows rng_seq to be larger than rng_idx along
    #             non-gather dims; we assume they match (the usual UnarySim case).

    shape = rng_idx.shape
    rng_len = rng_seq.shape[dim]
    pre = math.prod(shape[:dim]) if dim > 0 else 1
    rows = shape[dim]
    post = math.prod(shape[dim + 1:]) if dim < len(shape) - 1 else 1

    src_bytes = source.dtype.itemsize
    seq_bytes = rng_seq.dtype.itemsize
    idx_bytes = rng_idx.dtype.itemsize
    out_bytes = jnp.dtype(stype).itemsize

    if post % _LANES == 0 and post >= _LANES:
        # Main path: free reshape views, trailing axis packed as (nsub, 128) so
        # vregs are fully used even when `rows` (the gather dim) is tiny.
        nsub = post // _LANES
        src_v = source.reshape(pre, rows, nsub, _LANES)
        seq_v = rng_seq.reshape(pre, rng_len, nsub, _LANES)
        idx_v = rng_idx.reshape(pre, rows, nsub, _LANES)

        rb, sb = _pick_blocks(pre, rows, nsub, rng_len,
                              src_bytes + idx_bytes + out_bytes, seq_bytes)
        grid = (pre, pl.cdiv(rows, rb), pl.cdiv(nsub, sb))
        in_specs = [
            pl.BlockSpec((None, rb, sb, _LANES), lambda p, i, j: (p, i, j, 0)),       # source
            pl.BlockSpec((None, rng_len, sb, _LANES), lambda p, i, j: (p, 0, j, 0)),  # rng_seq
            pl.BlockSpec((None, rb, sb, _LANES), lambda p, i, j: (p, i, j, 0)),       # rng_idx
        ]
        out_spec = pl.BlockSpec((None, rb, sb, _LANES), lambda p, i, j: (p, i, j, 0))
        out_struct = jax.ShapeDtypeStruct((pre, rows, nsub, _LANES), stype)
    else:
        # Fallback: trailing size not a multiple of 128 — one full (rows, post)
        # slab per pre-index (block == full dims, always legal).
        # TODO(synk): pad `post` to a 128 multiple in the wrapper for very large
        #             unaligned shapes instead of taking one giant block.
        src_v = source.reshape(pre, rows, post)
        seq_v = rng_seq.reshape(pre, rng_len, post)
        idx_v = rng_idx.reshape(pre, rows, post)

        grid = (pre,)
        in_specs = [
            pl.BlockSpec((None, rows, post), lambda p: (p, 0, 0)),
            pl.BlockSpec((None, rng_len, post), lambda p: (p, 0, 0)),
            pl.BlockSpec((None, rows, post), lambda p: (p, 0, 0)),
        ]
        out_spec = pl.BlockSpec((None, rows, post), lambda p: (p, 0, 0))
        out_struct = jax.ShapeDtypeStruct((pre, rows, post), stype)

    n_elem = pre * rows * post
    cost = pl.CostEstimate(
        flops=2 * rng_len * n_elem,
        transcendentals=0,
        bytes_accessed=(n_elem * (src_bytes + idx_bytes + out_bytes)
                        + pre * rng_len * post * seq_bytes),
    )

    out = pl.pallas_call(
        functools.partial(_bsgen_kernel, rng_len=rng_len),
        out_shape=out_struct,
        grid_spec=pltpu.PrefetchScalarGridSpec(
            num_scalar_prefetch=0,
            grid=grid,
            in_specs=in_specs,
            out_specs=out_spec,
        ),
        compiler_params=pltpu.CompilerParams(
            dimension_semantics=("parallel",) * len(grid),
            vmem_limit_bytes=32 * 1024 * 1024,
        ),
        cost_estimate=cost,
    )(src_v, seq_v, idx_v)

    return out.reshape(shape)


class BSGenMulti:
    """JAX/Pallas port of UnarySim BSGenMulti (shares rng values along `dim`)."""

    def __init__(self, source, rng_seq, dim=0, stype=jnp.float32):
        self.source = source
        self.rng_seq = rng_seq
        self.dim = dim
        self.stype = stype

    def __call__(self, rng_idx):
        return bsgen_multi(self.source, self.rng_seq, rng_idx,
                           dim=self.dim, stype=self.stype)

    forward = __call__


if __name__ == "__main__":
    key = jax.random.PRNGKey(0)
    k1, k2, k3, k4, k5 = jax.random.split(key, 5)

    # Unary-computing style inputs: probabilities in [0, 1), NCHW activations.
    B, C, H, W = 2, 4, 16, 16
    L = 16                        # rng sequence length along the gather dim
    dim = 0

    source = jax.random.uniform(k1, (B, C, H, W), dtype=jnp.float32)
    rng_seq = jax.random.uniform(k2, (L, C, H, W), dtype=jnp.float32)
    rng_idx = jax.random.randint(k3, (B, C, H, W), 0, L, dtype=jnp.int32)

    mod = BSGenMulti(source, rng_seq, dim=dim, stype=jnp.float32)
    out = jax.block_until_ready(mod(rng_idx))

    # Reference: torch.gt(source, torch.gather(rng_seq, dim, rng_idx)).float()
    ref = (source > jnp.take_along_axis(rng_seq, rng_idx, axis=dim)).astype(jnp.float32)
    assert out.shape == source.shape
    assert out.dtype == jnp.float32
    assert bool(jnp.array_equal(out, ref))

    # Also exercise a gather along a non-leading dim (no host-side transpose now).
    dim2, L2 = 1, 8
    rng_seq2 = jax.random.uniform(k4, (B, L2, H, W), dtype=jnp.float32)
    rng_idx2 = jax.random.randint(k5, (B, C, H, W), 0, L2, dtype=jnp.int32)
    mod2 = BSGenMulti(source, rng_seq2, dim=dim2, stype=jnp.float32)
    out2 = jax.block_until_ready(mod2(rng_idx2))
    ref2 = (source > jnp.take_along_axis(rng_seq2, rng_idx2, axis=dim2)).astype(jnp.float32)
    assert out2.dtype == jnp.float32
    assert bool(jnp.array_equal(out2, ref2))

    print("KERNEL_OK")
</pallas_src>

<mosaic_0001>
module attributes {stable_mosaic.version = 11 : i64} {
  func.func @_bsgen_kernel(%arg0: i32, %arg1: i32, %arg2: i32, %arg3: memref<1x2x8x128xf32, #tpu.memory_space<vmem>>, %arg4: memref<1x16x8x128xf32, #tpu.memory_space<vmem>>, %arg5: memref<1x2x8x128xi32, #tpu.memory_space<vmem>>, %arg6: memref<1x2x8x128xf32, #tpu.memory_space<vmem>>) attributes {dimension_semantics = [#tpu.dimension_semantics<parallel>, #tpu.dimension_semantics<parallel>, #tpu.dimension_semantics<parallel>], iteration_bounds = array<i64: 1, 1, 1>, scalar_prefetch = 0 : i64, scratch_operands = 0 : i64, tpu.core_type = #tpu.core_type<tc>, window_params = [{transform_indices = @transform_0, window_bounds = array<i64: 1, 2, 8, 128>}, {transform_indices = @transform_1, window_bounds = array<i64: 1, 16, 8, 128>}, {transform_indices = @transform_2, window_bounds = array<i64: 1, 2, 8, 128>}, {transform_indices = @transform_3, window_bounds = array<i64: 1, 2, 8, 128>}]} {
    %c0 = arith.constant 0 : index
    %c0_0 = arith.constant 0 : index
    %c0_1 = arith.constant 0 : index
    %c0_2 = arith.constant 0 : index
    %0 = vector.load %arg5[%c0, %c0_0, %c0_1, %c0_2] : memref<1x2x8x128xi32, #tpu.memory_space<vmem>>, vector<1x2x8x128xi32>
    %1 = vector.shape_cast %0 : vector<1x2x8x128xi32> to vector<2x8x128xi32>
    %c0_3 = arith.constant 0 : index
    %c0_4 = arith.constant 0 : index
    %c0_5 = arith.constant 0 : index
    %c0_6 = arith.constant 0 : index
    %2 = vector.load %arg3[%c0_3, %c0_4, %c0_5, %c0_6] : memref<1x2x8x128xf32, #tpu.memory_space<vmem>>, vector<1x2x8x128xf32>
    %3 = vector.shape_cast %2 : vector<1x2x8x128xf32> to vector<2x8x128xf32>
    %c0_7 = arith.constant 0 : index
    %c0_8 = arith.constant 0 : index
    %c0_9 = arith.constant 0 : index
    %c0_10 = arith.constant 0 : index
    %4 = vector.load %arg4[%c0_7, %c0_8, %c0_9, %c0_10] : memref<1x16x8x128xf32, #tpu.memory_space<vmem>>, vector<1x1x8x128xf32>
    %5 = vector.shape_cast %4 : vector<1x1x8x128xf32> to vector<1x8x128xf32>
    %6 = vector.shape_cast %5 : vector<1x8x128xf32> to vector<1x8x128xf32>
    %7 = vector.broadcast %6 : vector<1x8x128xf32> to vector<2x8x128xf32>
    %c1_i32 = arith.constant 1 : i32
    %8 = vector.broadcast %c1_i32 : i32 to vector<2x8x128xi32>
    %9 = arith.cmpi eq, %1, %8 : vector<2x8x128xi32>
    %c0_11 = arith.constant 0 : index
    %c1 = arith.constant 1 : index
    %c0_12 = arith.constant 0 : index
    %c0_13 = arith.constant 0 : index
    %10 = vector.load %arg4[%c0_11, %c1, %c0_12, %c0_13] : memref<1x16x8x128xf32, #tpu.memory_space<vmem>>, vector<1x1x8x128xf32>
    %11 = vector.shape_cast %10 : vector<1x1x8x128xf32> to vector<1x8x128xf32>
    %12 = vector.shape_cast %11 : vector<1x8x128xf32> to vector<1x8x128xf32>
    %13 = vector.broadcast %12 : vector<1x8x128xf32> to vector<2x8x128xf32>
    %14 = arith.select %9, %13, %7 : vector<2x8x128xi1>, vector<2x8x128xf32>
    %c2_i32 = arith.constant 2 : i32
    %15 = vector.broadcast %c2_i32 : i32 to vector<2x8x128xi32>
    %16 = arith.cmpi eq, %1, %15 : vector<2x8x128xi32>
    %c0_14 = arith.constant 0 : index
    %c2 = arith.constant 2 : index
    %c0_15 = arith.constant 0 : index
    %c0_16 = arith.constant 0 : index
    %17 = vector.load %arg4[%c0_14, %c2, %c0_15, %c0_16] : memref<1x16x8x128xf32, #tpu.memory_space<vmem>>, vector<1x1x8x128xf32>
    %18 = vector.shape_cast %17 : vector<1x1x8x128xf32> to vector<1x8x128xf32>
    %19 = vector.shape_cast %18 : vector<1x8x128xf32> to vector<1x8x128xf32>
    %20 = vector.broadcast %19 : vector<1x8x128xf32> to vector<2x8x128xf32>
    %21 = arith.select %16, %20, %14 : vector<2x8x128xi1>, vector<2x8x128xf32>
    %c3_i32 = arith.constant 3 : i32
    %22 = vector.broadcast %c3_i32 : i32 to vector<2x8x128xi32>
    %23 = arith.cmpi eq, %1, %22 : vector<2x8x128xi32>
    %c0_17 = arith.constant 0 : index
    %c3 = arith.constant 3 : index
    %c0_18 = arith.constant 0 : index
    %c0_19 = arith.constant 0 : index
    %24 = vector.load %arg4[%c0_17, %c3, %c0_18, %c0_19] : memref<1x16x8x128xf32, #tpu.memory_space<vmem>>, vector<1x1x8x128xf32>
    %25 = vector.shape_cast %24 : vector<1x1x8x128xf32> to vector<1x8x128xf32>
    %26 = vector.shape_cast %25 : vector<1x8x128xf32> to vector<1x8x128xf32>
    %27 = vector.broadcast %26 : vector<1x8x128xf32> to vector<2x8x128xf32>
    %28 = arith.select %23, %27, %21 : vector<2x8x128xi1>, vector<2x8x128xf32>
    %c4_i32 = arith.constant 4 : i32
    %29 = vector.broadcast %c4_i32 : i32 to vector<2x8x128xi32>
    %30 = arith.cmpi eq, %1, %29 : vector<2x8x128xi32>
    %c0_20 = arith.constant 0 : index
    %c4 = arith.constant 4 : index
    %c0_21 = arith.constant 0 : index
    %c0_22 = arith.constant 0 : index
    %31 = vector.load %arg4[%c0_20, %c4, %c0_21, %c0_22] : memref<1x16x8x128xf32, #tpu.memory_space<vmem>>, vector<1x1x8x128xf32>
    %32 = vector.shape_cast %31 : vector<1x1x8x128xf32> to vector<1x8x128xf32>
    %33 = vector.shape_cast %32 : vector<1x8x128xf32> to vector<1x8x128xf32>
    %34 = vector.broadcast %33 : vector<1x8x128xf32> to vector<2x8x128xf32>
    %35 = arith.select %30, %34, %28 : vector<2x8x128xi1>, vector<2x8x128xf32>
    %c5_i32 = arith.constant 5 : i32
    %36 = vector.broadcast %c5_i32 : i32 to vector<2x8x128xi32>
    %37 = arith.cmpi eq, %1, %36 : vector<2x8x128xi32>
    %c0_23 = arith.constant 0 : index
    %c5 = arith.constant 5 : index
    %c0_24 = arith.constant 0 : index
    %c0_25 = arith.constant 0 : index
    %38 = vector.load %arg4[%c0_23, %c5, %c0_24, %c0_25] : memref<1x16x8x128xf32, #tpu.memory_space<vmem>>, vector<1x1x8x128xf32>
    %39 = vector.shape_cast %38 : vector<1x1x8x128xf32> to vector<1x8x128xf32>
    %40 = vector.shape_cast %39 : vector<1x8x128xf32> to vector<1x8x128xf32>
    %41 = vector.broadcast %40 : vector<1x8x128xf32> to vector<2x8x128xf32>
    %42 = arith.select %37, %41, %35 : vector<2x8x128xi1>, vector<2x8x128xf32>
    %c6_i32 = arith.constant 6 : i32
    %43 = vector.broadcast %c6_i32 : i32 to vector<2x8x128xi32>
    %44 = arith.cmpi eq, %1, %43 : vector<2x8x128xi32>
    %c0_26 = arith.constant 0 : index
    %c6 = arith.constant 6 : index
    %c0_27 = arith.constant 0 : index
    %c0_28 = arith.constant 0 : index
    %45 = vector.load %arg4[%c0_26, %c6, %c0_27, %c0_28] : memref<1x16x8x128xf32, #tpu.memory_space<vmem>>, vector<1x1x8x128xf32>
    %46 = vector.shape_cast %45 : vector<1x1x8x128xf32> to vector<1x8x128xf32>
    %47 = vector.shape_cast %46 : vector<1x8x128xf32> to vector<1x8x128xf32>
    %48 = vector.broadcast %47 : vector<1x8x128xf32> to vector<2x8x128xf32>
    %49 = arith.select %44, %48, %42 : vector<2x8x128xi1>, vector<2x8x128xf32>
    %c7_i32 = arith.constant 7 : i32
    %50 = vector.broadcast %c7_i32 : i32 to vector<2x8x128xi32>
    %51 = arith.cmpi eq, %1, %50 : vector<2x8x128xi32>
    %c0_29 = arith.constant 0 : index
    %c7 = arith.constant 7 : index
    %c0_30 = arith.constant 0 : index
    %c0_31 = arith.constant 0 : index
    %52 = vector.load %arg4[%c0_29, %c7, %c0_30, %c0_31] : memref<1x16x8x128xf32, #tpu.memory_space<vmem>>, vector<1x1x8x128xf32>
    %53 = vector.shape_cast %52 : vector<1x1x8x128xf32> to vector<1x8x128xf32>
    %54 = vector.shape_cast %53 : vector<1x8x128xf32> to vector<1x8x128xf32>
    %55 = vector.broadcast %54 : vector<1x8x128xf32> to vector<2x8x128xf32>
    %56 = arith.select %51, %55, %49 : vector<2x8x128xi1>, vector<2x8x128xf32>
    %c8_i32 = arith.constant 8 : i32
    %57 = vector.broadcast %c8_i32 : i32 to vector<2x8x128xi32>
    %58 = arith.cmpi eq, %1, %57 : vector<2x8x128xi32>
    %c0_32 = arith.constant 0 : index
    %c8 = arith.constant 8 : index
    %c0_33 = arith.constant 0 : index
    %c0_34 = arith.constant 0 : index
    %59 = vector.load %arg4[%c0_32, %c8, %c0_33, %c0_34] : memref<1x16x8x128xf32, #tpu.memory_space<vmem>>, vector<1x1x8x128xf32>
    %60 = vector.shape_cast %59 : vector<1x1x8x128xf32> to vector<1x8x128xf32>
    %61 = vector.shape_cast %60 : vector<1x8x128xf32> to vector<1x8x128xf32>
    %62 = vector.broadcast %61 : vector<1x8x128xf32> to vector<2x8x128xf32>
    %63 = arith.select %58, %62, %56 : vector<2x8x128xi1>, vector<2x8x128xf32>
    %c9_i32 = arith.constant 9 : i32
    %64 = vector.broadcast %c9_i32 : i32 to vector<2x8x128xi32>
    %65 = arith.cmpi eq, %1, %64 : vector<2x8x128xi32>
    %c0_35 = arith.constant 0 : index
    %c9 = arith.constant 9 : index
    %c0_36 = arith.constant 0 : index
    %c0_37 = arith.constant 0 : index
    %66 = vector.load %arg4[%c0_35, %c9, %c0_36, %c0_37] : memref<1x16x8x128xf32, #tpu.memory_space<vmem>>, vector<1x1x8x128xf32>
    %67 = vector.shape_cast %66 : vector<1x1x8x128xf32> to vector<1x8x128xf32>
    %68 = vector.shape_cast %67 : vector<1x8x128xf32> to vector<1x8x128xf32>
    %69 = vector.broadcast %68 : vector<1x8x128xf32> to vector<2x8x128xf32>
    %70 = arith.select %65, %69, %63 : vector<2x8x128xi1>, vector<2x8x128xf32>
    %c10_i32 = arith.constant 10 : i32
    %71 = vector.broadcast %c10_i32 : i32 to vector<2x8x128xi32>
    %72 = arith.cmpi eq, %1, %71 : vector<2x8x128xi32>
    %c0_38 = arith.constant 0 : index
    %c10 = arith.constant 10 : index
    %c0_39 = arith.constant 0 : index
    %c0_40 = arith.constant 0 : index
    %73 = vector.load %arg4[%c0_38, %c10, %c0_39, %c0_40] : memref<1x16x8x128xf32, #tpu.memory_space<vmem>>, vector<1x1x8x128xf32>
    %74 = vector.shape_cast %73 : vector<1x1x8x128xf32> to vector<1x8x128xf32>
    %75 = vector.shape_cast %74 : vector<1x8x128xf32> to vector<1x8x128xf32>
    %76 = vector.broadcast %75 : vector<1x8x128xf32> to vector<2x8x128xf32>
    %77 = arith.select %72, %76, %70 : vector<2x8x128xi1>, vector<2x8x128xf32>
    %c11_i32 = arith.constant 11 : i32
    %78 = vector.broadcast %c11_i32 : i32 to vector<2x8x128xi32>
    %79 = arith.cmpi eq, %1, %78 : vector<2x8x128xi32>
    %c0_41 = arith.constant 0 : index
    %c11 = arith.constant 11 : index
    %c0_42 = arith.constant 0 : index
    %c0_43 = arith.constant 0 : index
    %80 = vector.load %arg4[%c0_41, %c11, %c0_42, %c0_43] : memref<1x16x8x128xf32, #tpu.memory_space<vmem>>, vector<1x1x8x128xf32>
    %81 = vector.shape_cast %80 : vector<1x1x8x128xf32> to vector<1x8x128xf32>
    %82 = vector.shape_cast %81 : vector<1x8x128xf32> to vector<1x8x128xf32>
    %83 = vector.broadcast %82 : vector<1x8x128xf32> to vector<2x8x128xf32>
    %84 = arith.select %79, %83, %77 : vector<2x8x128xi1>, vector<2x8x128xf32>
    %c12_i32 = arith.constant 12 : i32
    %85 = vector.broadcast %c12_i32 : i32 to vector<2x8x128xi32>
    %86 = arith.cmpi eq, %1, %85 : vector<2x8x128xi32>
    %c0_44 = arith.constant 0 : index
    %c12 = arith.constant 12 : index
    %c0_45 = arith.constant 0 : index
    %c0_46 = arith.constant 0 : index
    %87 = vector.load %arg4[%c0_44, %c12, %c0_45, %c0_46] : memref<1x16x8x128xf32, #tpu.memory_space<vmem>>, vector<1x1x8x128xf32>
    %88 = vector.shape_cast %87 : vector<1x1x8x128xf32> to vector<1x8x128xf32>
    %89 = vector.shape_cast %88 : vector<1x8x128xf32> to vector<1x8x128xf32>
    %90 = vector.broadcast %89 : vector<1x8x128xf32> to vector<2x8x128xf32>
    %91 = arith.select %86, %90, %84 : vector<2x8x128xi1>, vector<2x8x128xf32>
    %c13_i32 = arith.constant 13 : i32
    %92 = vector.broadcast %c13_i32 : i32 to vector<2x8x128xi32>
    %93 = arith.cmpi eq, %1, %92 : vector<2x8x128xi32>
    %c0_47 = arith.constant 0 : index
    %c13 = arith.constant 13 : index
    %c0_48 = arith.constant 0 : index
    %c0_49 = arith.constant 0 : index
    %94 = vector.load %arg4[%c0_47, %c13, %c0_48, %c0_49] : memref<1x16x8x128xf32, #tpu.memory_space<vmem>>, vector<1x1x8x128xf32>
    %95 = vector.shape_cast %94 : vector<1x1x8x128xf32> to vector<1x8x128xf32>
    %96 = vector.shape_cast %95 : vector<1x8x128xf32> to vector<1x8x128xf32>
    %97 = vector.broadcast %96 : vector<1x8x128xf32> to vector<2x8x128xf32>
    %98 = arith.select %93, %97, %91 : vector<2x8x128xi1>, vector<2x8x128xf32>
    %c14_i32 = arith.constant 14 : i32
    %99 = vector.broadcast %c14_i32 : i32 to vector<2x8x128xi32>
    %100 = arith.cmpi eq, %1, %99 : vector<2x8x128xi32>
    %c0_50 = arith.constant 0 : index
    %c14 = arith.constant 14 : index
    %c0_51 = arith.constant 0 : index
    %c0_52 = arith.constant 0 : index
    %101 = vector.load %arg4[%c0_50, %c14, %c0_51, %c0_52] : memref<1x16x8x128xf32, #tpu.memory_space<vmem>>, vector<1x1x8x128xf32>
    %102 = vector.shape_cast %101 : vector<1x1x8x128xf32> to vector<1x8x128xf32>
    %103 = vector.shape_cast %102 : vector<1x8x128xf32> to vector<1x8x128xf32>
    %104 = vector.broadcast %103 : vector<1x8x128xf32> to vector<2x8x128xf32>
    %105 = arith.select %100, %104, %98 : vector<2x8x128xi1>, vector<2x8x128xf32>
    %c15_i32 = arith.constant 15 : i32
    %106 = vector.broadcast %c15_i32 : i32 to vector<2x8x128xi32>
    %107 = arith.cmpi eq, %1, %106 : vector<2x8x128xi32>
    %c0_53 = arith.constant 0 : index
    %c15 = arith.constant 15 : index
    %c0_54 = arith.constant 0 : index
    %c0_55 = arith.constant 0 : index
    %108 = vector.load %arg4[%c0_53, %c15, %c0_54, %c0_55] : memref<1x16x8x128xf32, #tpu.memory_space<vmem>>, vector<1x1x8x128xf32>
    %109 = vector.shape_cast %108 : vector<1x1x8x128xf32> to vector<1x8x128xf32>
    %110 = vector.shape_cast %109 : vector<1x8x128xf32> to vector<1x8x128xf32>
    %111 = vector.broadcast %110 : vector<1x8x128xf32> to vector<2x8x128xf32>
    %112 = arith.select %107, %111, %105 : vector<2x8x128xi1>, vector<2x8x128xf32>
    %113 = arith.cmpf ogt, %3, %112 : vector<2x8x128xf32>
    %114 = arith.extui %113 : vector<2x8x128xi1> to vector<2x8x128xi32>
    %115 = arith.sitofp %114 : vector<2x8x128xi32> to vector<2x8x128xf32>
    %c0_56 = arith.constant 0 : index
    %c0_57 = arith.constant 0 : index
    %c0_58 = arith.constant 0 : index
    %c0_59 = arith.constant 0 : index
    %116 = vector.load %arg6[%c0_56, %c0_57, %c0_58, %c0_59] : memref<1x2x8x128xf32, #tpu.memory_space<vmem>>, vector<1x2x8x128xf32>
    %117 = vector.shape_cast %116 : vector<1x2x8x128xf32> to vector<2x8x128xf32>
    %118 = vector.shape_cast %115 : vector<2x8x128xf32> to vector<1x2x8x128xf32>
    tpu.vector_store %arg6[%c0_56, %c0_57, %c0_58, %c0_59], %118 {strides = array<i32>} : memref<1x2x8x128xf32, #tpu.memory_space<vmem>>, vector<1x2x8x128xf32>,
    return
  }
  func.func @transform_0(%arg0: i32, %arg1: i32, %arg2: i32) -> (i32, i32, i32, i32) {
    %c0_i32 = arith.constant 0 : i32
    %c0_i32_0 = arith.constant 0 : i32
    return %arg0, %arg1, %arg2, %c0_i32 : i32, i32, i32, i32
  }
  func.func @transform_1(%arg0: i32, %arg1: i32, %arg2: i32) -> (i32, i32, i32, i32) {
    %c0_i32 = arith.constant 0 : i32
    %c0_i32_0 = arith.constant 0 : i32
    %c0_i32_1 = arith.constant 0 : i32
    return %arg0, %c0_i32, %arg2, %c0_i32_0 : i32, i32, i32, i32
  }
  func.func @transform_2(%arg0: i32, %arg1: i32, %arg2: i32) -> (i32, i32, i32, i32) {
    %c0_i32 = arith.constant 0 : i32
    %c0_i32_0 = arith.constant 0 : i32
    return %arg0, %arg1, %arg2, %c0_i32 : i32, i32, i32, i32
  }
  func.func @transform_3(%arg0: i32, %arg1: i32, %arg2: i32) -> (i32, i32, i32, i32) {
    %c0_i32 = arith.constant 0 : i32
    %c0_i32_0 = arith.constant 0 : i32
    return %arg0, %arg1, %arg2, %c0_i32 : i32, i32, i32, i32
  }
}

</mosaic_0001>

<llo_original>
// kernel: tpu_custom_call.1
$region0: #{tpu_custom_call.1}
  #allocation0 [shape = 'u32[]', space=smem, size = 0x4, offset = 0x4, fixed_abs, tag = 'smem constant byte address 0x4 - core index']
  #allocation1 [shape = 'u32[144,128]{1,0:T(1,128)}', space=vmem, size = 0x12000, scoped, tag = 'internal scratch']
  %s0 = inlined_call_operand.hbm [shape: f32[1,2,8,128], index: 0, kind: input, shape index: {}]
  %s1 = inlined_call_operand.hbm [shape: f32[1,16,8,128], index: 1, kind: input, shape index: {}]
  %s2 = inlined_call_operand.hbm [shape: s32[1,2,8,128], index: 2, kind: input, shape index: {}]
  %s3 = inlined_call_operand.hbm [shape: f32[1,2,8,128], index: 3, kind: output, shape index: {}]
  %s4 = sld [smem:[#allocation0]]
  $region34: #{tpu_custom_call.1} parent=0
    _
  %s6 = ssub.s32 1, %s4
  %s7 = scalar_select 0, %s6, %s4
  $region1: #{tpu_custom_call.1} parent=0
    #allocation2 [shape = 'u8[8192]{0}', space=vmem, size = 0x2000, scoped, tag = 'input window, operand 0, single buffered']
    #allocation3 [shape = 's32[1]{0}', space=sflag, size = 0x4, scoped, tag = 'scoped memory for tpu_custom_call.1']
    #allocation4 [shape = 's32[1]{0}', space=sflag, size = 0x4, scoped, tag = 'scoped memory for tpu_custom_call.1']
    #allocation5 [shape = 'u8[65536]{0}', space=vmem, size = 0x10000, scoped, tag = 'input window, operand 1, single buffered']
    #allocation6 [shape = 's32[1]{0}', space=sflag, size = 0x4, scoped, tag = 'scoped memory for tpu_custom_call.1']
    #allocation7 [shape = 'u8[8192]{0}', space=vmem, size = 0x2000, scoped, tag = 'input window, operand 2, single buffered']
    #allocation8 [shape = 'u8[8192]{0}', space=vmem, size = 0x2000, scoped, tag = 'output window, operand 0, single buffered']
    %8 = vsyncpa [#allocation3], 0
    %9 = vsyncpa [#allocation6], 0
    %10 = vsyncpa [#allocation4], 0
    // Predicated region
    $region2: #{tpu_custom_call.1} parent=1 // pred_check
      _
    $region3: #{tpu_custom_call.1} parent=1 // pred_check_branch
      %12 = sbr.rel (0) target = $region5
    $region4: #{tpu_custom_call.1} parent=1 // pred_region
      %s14 = ssub.s32 256, 256
      %15 = vsyncadd [#allocation3], %s14
      %s16 = sshll.u32 [#allocation2], 4
      %s17 = int_to_ptr.vmem [resolvable:$true] %s16
      %22 = dma.hbm_to_vmem [thread:$0]  %s0, 256, %s17, [#allocation3], 128, 128, 8
    $region5: #{tpu_custom_call.1} parent=1 // pred_fallthru
      _
    // Predicated region
    $region6: #{tpu_custom_call.1} parent=1 // pred_check
      _
    $region7: #{tpu_custom_call.1} parent=1 // pred_check_branch
      %24 = sbr.rel (0) target = $region9
    $region8: #{tpu_custom_call.1} parent=1 // pred_region
      %s26 = ssub.s32 2048, 2048
      %27 = vsyncadd [#allocation6], %s26
      %s28 = sshll.u32 [#allocation5], 4
      %s29 = int_to_ptr.vmem [resolvable:$true] %s28
      %34 = dma.hbm_to_vmem [thread:$0]  %s1, 2048, %s29, [#allocation6], 128, 128, 8
    $region9: #{tpu_custom_call.1} parent=1 // pred_fallthru
      _
    // Predicated region
    $region10: #{tpu_custom_call.1} parent=1 // pred_check
      _
    $region11: #{tpu_custom_call.1} parent=1 // pred_check_branch
      %36 = sbr.rel (0) target = $region13
    $region12: #{tpu_custom_call.1} parent=1 // pred_region
      %s38 = ssub.s32 256, 256
      %39 = vsyncadd [#allocation6], %s38
      %s40 = sshll.u32 [#allocation7], 4
      %s41 = int_to_ptr.vmem [resolvable:$true] %s40
      %46 = dma.hbm_to_vmem [thread:$0]  %s2, 256, %s41, [#allocation6], 128, 128, 8
    $region13: #{tpu_custom_call.1} parent=1 // pred_fallthru
      _
    // Predicated region
    $region14: #{tpu_custom_call.1} parent=1 // pred_check
      _
    $region15: #{tpu_custom_call.1} parent=1 // pred_check_branch
      %48 = sbr.rel (0) target = $region17
    $region16: #{tpu_custom_call.1} parent=1 // pred_region
      %49 = dma.done [#allocation3], 256
    $region17: #{tpu_custom_call.1} parent=1 // pred_fallthru
      _
    // Predicated region
    $region18: #{tpu_custom_call.1} parent=1 // pred_check
      _
    $region19: #{tpu_custom_call.1} parent=1 // pred_check_branch
      %51 = sbr.rel (0) target = $region21
    $region20: #{tpu_custom_call.1} parent=1 // pred_region
      %52 = dma.done [#allocation6], 2048
    $region21: #{tpu_custom_call.1} parent=1 // pred_fallthru
      _
    // Predicated region
    $region22: #{tpu_custom_call.1} parent=1 // pred_check
      _
    $region23: #{tpu_custom_call.1} parent=1 // pred_check_branch
      %54 = sbr.rel (0) target = $region25
    $region24: #{tpu_custom_call.1} parent=1 // pred_region
      %55 = dma.done [#allocation6], 256
    $region25: #{tpu_custom_call.1} parent=1 // pred_fallthru
      _
    %v56 = vld [vmem:[#allocation7] sm:$0xff]
    %v57 = vld [vmem:[#allocation7 + $0x8] sm:$0xff]
    %v58 = vld [vmem:[#allocation2] sm:$0xff]
    %v59 = vld [vmem:[#allocation2 + $0x8] sm:$0xff]
    %v60 = vld [vmem:[#allocation5] sm:$0xff]
    %vm61 = vcmp.eq.s32.totalorder %v56, 1
    %vm62 = vcmp.eq.s32.totalorder %v57, 1
    %s63 = scalar_lea.vmem [#allocation5], 8
    %v64 = vld [vmem:[%s63] sm:$0xff]
    %v65 = vsel %vm61, %v64, %v60
    %v66 = vsel %vm62, %v64, %v60
    %vm67 = vcmp.eq.s32.totalorder %v56, 2
    %vm68 = vcmp.eq.s32.totalorder %v57, 2
    %s69 = scalar_lea.vmem [#allocation5], 16
    %v70 = vld [vmem:[%s69] sm:$0xff]
    %v71 = vsel %vm67, %v70, %v65
    %v72 = vsel %vm68, %v70, %v66
    %vm73 = vcmp.eq.s32.totalorder %v56, 3
    %vm74 = vcmp.eq.s32.totalorder %v57, 3
    %s75 = scalar_lea.vmem [#allocation5], 24
    %v76 = vld [vmem:[%s75] sm:$0xff]
    %v77 = vsel %vm73, %v76, %v71
    %v78 = vsel %vm74, %v76, %v72
    %vm79 = vcmp.eq.s32.totalorder %v56, 4
    %vm80 = vcmp.eq.s32.totalorder %v57, 4
    %s81 = scalar_lea.vmem [#allocation5], 32
    %v82 = vld [vmem:[%s81] sm:$0xff]
    %v83 = vsel %vm79, %v82, %v77
    %v84 = vsel %vm80, %v82, %v78
    %vm85 = vcmp.eq.s32.totalorder %v56, 5
    %vm86 = vcmp.eq.s32.totalorder %v57, 5
    %s87 = scalar_lea.vmem [#allocation5], 40
    %v88 = vld [vmem:[%s87] sm:$0xff]
    %v89 = vsel %vm85, %v88, %v83
    %v90 = vsel %vm86, %v88, %v84
    %vm91 = vcmp.eq.s32.totalorder %v56, 6
    %vm92 = vcmp.eq.s32.totalorder %v57, 6
    %s93 = scalar_lea.vmem [#allocation5], 48
    %v94 = vld [vmem:[%s93] sm:$0xff]
    %v95 = vsel %vm91, %v94, %v89
    %v96 = vsel %vm92, %v94, %v90
    %vm97 = vcmp.eq.s32.totalorder %v56, 7
    %vm98 = vcmp.eq.s32.totalorder %v57, 7
    %s99 = scalar_lea.vmem [#allocation5], 56
    %v100 = vld [vmem:[%s99] sm:$0xff]
    %v101 = vsel %vm97, %v100, %v95
    %v102 = vsel %vm98, %v100, %v96
    %vm103 = vcmp.eq.s32.totalorder %v56, 8
    %vm104 = vcmp.eq.s32.totalorder %v57, 8
    %s105 = scalar_lea.vmem [#allocation5], 64
    %v106 = vld [vmem:[%s105] sm:$0xff]
    %v107 = vsel %vm103, %v106, %v101
    %v108 = vsel %vm104, %v106, %v102
    %vm109 = vcmp.eq.s32.totalorder %v56, 9
    %vm110 = vcmp.eq.s32.totalorder %v57, 9
    %s111 = scalar_lea.vmem [#allocation5], 72
    %v112 = vld [vmem:[%s111] sm:$0xff]
    %v113 = vsel %vm109, %v112, %v107
    %v114 = vsel %vm110, %v112, %v108
    %vm115 = vcmp.eq.s32.totalorder %v56, 10
    %vm116 = vcmp.eq.s32.totalorder %v57, 10
    %s117 = scalar_lea.vmem [#allocation5], 80
    %v118 = vld [vmem:[%s117] sm:$0xff]
    %v119 = vsel %vm115, %v118, %v113
    %v120 = vsel %vm116, %v118, %v114
    %vm121 = vcmp.eq.s32.totalorder %v56, 11
    %vm122 = vcmp.eq.s32.totalorder %v57, 11
    %s123 = scalar_lea.vmem [#allocation5], 88
    %v124 = vld [vmem:[%s123] sm:$0xff]
    %v125 = vsel %vm121, %v124, %v119
    %v126 = vsel %vm122, %v124, %v120
    %vm127 = vcmp.eq.s32.totalorder %v56, 12
    %vm128 = vcmp.eq.s32.totalorder %v57, 12
    %s129 = scalar_lea.vmem [#allocation5], 96
    %v130 = vld [vmem:[%s129] sm:$0xff]
    %v131 = vsel %vm127, %v130, %v125
    %v132 = vsel %vm128, %v130, %v126
    %vm133 = vcmp.eq.s32.totalorder %v56, 13
    %vm134 = vcmp.eq.s32.totalorder %v57, 13
    %s135 = scalar_lea.vmem [#allocation5], 104
    %v136 = vld [vmem:[%s135] sm:$0xff]
    %v137 = vsel %vm133, %v136, %v131
    %v138 = vsel %vm134, %v136, %v132
    %vm139 = vcmp.eq.s32.totalorder %v56, 14
    %vm140 = vcmp.eq.s32.totalorder %v57, 14
    %s141 = scalar_lea.vmem [#allocation5], 112
    %v142 = vld [vmem:[%s141] sm:$0xff]
    %v143 = vsel %vm139, %v142, %v137
    %v144 = vsel %vm140, %v142, %v138
    %vm145 = vcmp.eq.s32.totalorder %v56, 15
    %vm146 = vcmp.eq.s32.totalorder %v57, 15
    %s147 = scalar_lea.vmem [#allocation5], 120
    %v148 = vld [vmem:[%s147] sm:$0xff]
    %v149 = vsel %vm145, %v148, %v143
    %v150 = vsel %vm146, %v148, %v144
    %vm151 = vcmp.gt.f32.partialorder %v58, %v149
    %vm152 = vcmp.gt.f32.partialorder %v59, %v150
    %v153 = vsel %vm151, 1, 0
    %v154 = vsel %vm152, 1, 0
    %v155 = vcvt.s32.f32 %v153
    %v156 = vcvt.s32.f32 %v154
    %157 = vst [vmem:[#allocation8] sm:$0xff] %v155
    %158 = vst [vmem:[#allocation8 + $0x8] sm:$0xff] %v156
    // Predicated region
    $region26: #{tpu_custom_call.1} parent=1 // pred_check
      _
    $region27: #{tpu_custom_call.1} parent=1 // pred_check_branch
      %160 = sbr.rel (0) target = $region29
    $region28: #{tpu_custom_call.1} parent=1 // pred_region
      %s162 = ssub.s32 256, 256
      %163 = vsyncadd [#allocation4], %s162
      %s164 = sshll.u32 [#allocation8], 4
      %s165 = int_to_ptr.vmem [resolvable:$true] %s164
      %170 = dma.vmem_to_hbm [thread:$0]  %s165, 256, %s3, [#allocation4], 128, 128, 8
    $region29: #{tpu_custom_call.1} parent=1 // pred_fallthru
      _
    // Predicated region
    $region30: #{tpu_custom_call.1} parent=1 // pred_check
      _
    $region31: #{tpu_custom_call.1} parent=1 // pred_check_branch
      %172 = sbr.rel (0) target = $region33
    $region32: #{tpu_custom_call.1} parent=1 // pred_region
      %173 = dma.done [#allocation4], 256
    $region33: #{tpu_custom_call.1} parent=1 // pred_fallthru
      _
    %174 = vsyncpa [#allocation3], 1
    %175 = vsyncpa [#allocation6], 1
    %176 = vsyncpa [#allocation4], 1

</llo_original>
